<compile_context>
chip_gen: v7x
topology: tpu7x:2x2x1
jax: 0.10.0
libtpu: 0.0.40
codegen_flags: <defaults>
</compile_context>

<pallas_src>
import functools

import jax
import jax.numpy as jnp
from jax.experimental import pallas as pl
from jax.experimental.pallas import tpu as pltpu


# ------------------------------------------------------------------
# Fused Finetunemodel kernel: one lane-slab of B_TILE images per grid step.
# ------------------------------------------------------------------
def _finetune_kernel(x_ref, w_ref, b_ref, i_ref, r_ref, *, H, W, HW, C, L):
    # x_ref: (C, L) f32   input slab, lane = img*HW + row*W + col
    # w_ref: (3, C, 9C) bf16  im2col weights for the 3 convs (BN folded into #1)
    # b_ref: (3, C, 1)  f32   biases (BN folded into #1)
    # i_ref / r_ref: (C, L) f32 outputs
    x = x_ref[...]                                   # (C, L) f32
    w = w_ref[...]                                   # (3, C, 9C) bf16
    b = b_ref[...]                                   # (3, C, 1) f32

    # ---- per-tap boundary masks, built in-kernel once per grid step -------
    # Float index math is exact for L <= 2**23 (enforced by the wrapper).
    lane = jax.lax.broadcasted_iota(jnp.int32, (1, L), 1).astype(jnp.float32)
    img = jnp.floor((lane + 0.5) / HW)               # which image in the slab
    q = lane - img * HW                              # pixel index within image
    row = jnp.floor((q + 0.5) / W)
    col = q - row * W
    top = (row >= 1.0).astype(jnp.float32)           # tap row-1 is valid
    bot = (row <= H - 2.0).astype(jnp.float32)       # tap row+1 is valid
    left = (col >= 1.0).astype(jnp.float32)          # tap col-1 is valid
    right = (col <= W - 2.0).astype(jnp.float32)     # tap col+1 is valid

    fmask = []                                       # (1, L) f32 masks, hoisted
    for t in range(9):
        oy, ox = t // 3 - 1, t % 3 - 1
        m = None
        if oy == -1:
            m = top
        elif oy == 1:
            m = bot
        if ox == -1:
            m = left if m is None else m * left
        elif ox == 1:
            m = right if m is None else m * right
        fmask.append(m)                              # None => center tap (always valid)

    def conv3x3(act, layer):
        # Build the (9C, L) im2col patch as a value: 9 lane-rolled + masked
        # copies of `act`, then one MXU matmul (C, 9C) @ (9C, L) -> (C, L).
        taps = []
        for t in range(9):
            oy, ox = t // 3 - 1, t % 3 - 1
            off = oy * W + ox
            if off == 0:
                tap = act
            else:
                tap = pltpu.roll(act, shift=(-off) % L, axis=1) * fmask[t]
            taps.append(tap)
        patch = jnp.concatenate(taps, axis=0).astype(jnp.bfloat16)   # (9C, L)
        acc = jnp.dot(w[layer], patch, preferred_element_type=jnp.float32)
        return acc + b[layer]                        # (C, 1) broadcast over lanes

    # EnhanceNetwork(layers=1, channels=3), eval-mode BN folded into conv #1.
    fea = jnp.maximum(conv3x3(x, 0), 0.0)            # in_conv  + ReLU
    fea = fea + jnp.maximum(conv3x3(fea, 1), 0.0)    # conv + BN + ReLU, residual
    fea = jax.nn.sigmoid(conv3x3(fea, 2))            # out_conv + Sigmoid

    illu = jnp.clip(fea + x, 0.0001, 1.0)            # i
    i_ref[...] = illu
    r_ref[...] = jnp.clip(x * pl.reciprocal(illu, approx=True), 0.0, 1.0)   # r


# ------------------------------------------------------------------
# Wrapper: lane-dense relayout, grid/tile selection, pallas_call.
# ------------------------------------------------------------------
def _choose_b_tile(N, HW):
    """Images per grid step, sized to a conservative per-step VMEM budget."""
    if HW % 128 != 0:
        # Lane blocks must be 128-aligned unless they span the full lane axis.
        return N
    vmem_budget = 36 * 1024 * 1024      # conservative compute budget (fits v7x)
    bytes_per_lane = 500                # f32 x/i/r dbl-buffered + f32 taps + bf16 patch
    max_lanes = max(HW, vmem_budget // bytes_per_lane)
    b = max(1, min(N, max_lanes // HW))
    if N >= 2:
        b = min(b, pl.cdiv(N, 2))       # keep >= 2 grid steps for v7x's 2 TCs
    while b * HW > (1 << 23) and b > 1:  # keep in-kernel float index math exact
        b //= 2
    return b


def finetune_pallas(w_all, b_all, x_nchw):
    """x_nchw: (N, 3, H, W) f32. Returns (i, r), each (N, 3, H, W) f32."""
    N, C, H, W = x_nchw.shape
    HW = H * W
    b_tile = _choose_b_tile(N, HW)
    G = pl.cdiv(N, b_tile)
    N_pad = G * b_tile
    L = b_tile * HW

    x = x_nchw.astype(jnp.float32)
    if N_pad != N:
        x = jnp.pad(x, ((0, N_pad - N), (0, 0), (0, 0), (0, 0)))
    # Lane-dense layout: (C, N_pad*H*W), batch concatenated on the lane axis.
    x_flat = jnp.transpose(x, (1, 0, 2, 3)).reshape(C, N_pad * HW)

    kernel = functools.partial(_finetune_kernel, H=H, W=W, HW=HW, C=C, L=L)
    i_flat, r_flat = pl.pallas_call(
        kernel,
        out_shape=(jax.ShapeDtypeStruct((C, N_pad * HW), jnp.float32),
                   jax.ShapeDtypeStruct((C, N_pad * HW), jnp.float32)),
        grid=(G,),
        in_specs=[
            pl.BlockSpec((C, L), lambda g: (0, g)),
            pl.BlockSpec((3, C, 9 * C), lambda g: (0, 0, 0)),
            pl.BlockSpec((3, C, 1), lambda g: (0, 0, 0)),
        ],
        out_specs=(
            pl.BlockSpec((C, L), lambda g: (0, g)),
            pl.BlockSpec((C, L), lambda g: (0, g)),
        ),
        compiler_params=pltpu.CompilerParams(
            dimension_semantics=("parallel",),
            vmem_limit_bytes=56 * 1024 * 1024,
        ),
    )(x_flat, w_all, b_all)

    def unflatten(y):
        return y.reshape(C, N_pad, H, W).transpose(1, 0, 2, 3)[:N]

    return unflatten(i_flat), unflatten(r_flat)


# ------------------------------------------------------------------
# Parameter init (deterministic stand-in for torch.load) and packing.
# ------------------------------------------------------------------
def init_params(key):
    ks = jax.random.split(key, 10)

    def conv_init(kw, kb, cin, cout):
        w = 0.02 * jax.random.normal(kw, (cout, cin, 3, 3), jnp.float32)
        b = 0.01 * jax.random.normal(kb, (cout,), jnp.float32)
        return w, b

    p = {}
    p["w1"], p["b1"] = conv_init(ks[0], ks[1], 3, 3)   # in_conv
    p["w2"], p["b2"] = conv_init(ks[2], ks[3], 3, 3)   # block conv
    p["w3"], p["b3"] = conv_init(ks[4], ks[5], 3, 3)   # out_conv
    p["gamma"] = 1.0 + 0.02 * jax.random.normal(ks[6], (3,), jnp.float32)
    p["beta"] = 0.02 * jax.random.normal(ks[7], (3,), jnp.float32)
    p["rmean"] = 0.01 * jax.random.normal(ks[8], (3,), jnp.float32)
    p["rvar"] = 1.0 + 0.05 * jnp.abs(jax.random.normal(ks[9], (3,), jnp.float32))
    return p


def pack_params(p, eps=1e-5):
    """Fold eval-mode BN into conv #1 and pack weights into im2col (bf16) form."""
    def to_mat(w):  # (cout, cin, 3, 3) -> (cout, 9*cin), tap-major columns
        cout, cin, kh, kw = w.shape
        return jnp.transpose(w, (0, 2, 3, 1)).reshape(cout, kh * kw * cin)

    scale = p["gamma"] / jnp.sqrt(p["rvar"] + eps)
    w2f = p["w2"] * scale[:, None, None, None]
    b2f = (p["b2"] - p["rmean"]) * scale + p["beta"]

    w_all = jnp.stack([to_mat(p["w1"]), to_mat(w2f), to_mat(p["w3"])], 0)
    b_all = jnp.stack([p["b1"], b2f, p["b3"]], 0)[..., None]
    return w_all.astype(jnp.bfloat16), b_all.astype(jnp.float32)


# ------------------------------------------------------------------
# Pure-JAX reference (un-fused, un-folded, f32) for correctness checking.
# ------------------------------------------------------------------
def _conv2d_ref(x, w, b):
    out = jax.lax.conv_general_dilated(
        x, w, window_strides=(1, 1), padding=((1, 1), (1, 1)),
        dimension_numbers=("NCHW", "OIHW", "NCHW"),
        precision=jax.lax.Precision.HIGHEST)
    return out + b[None, :, None, None]


def finetune_ref(p, x, eps=1e-5):
    fea = jax.nn.relu(_conv2d_ref(x, p["w1"], p["b1"]))
    t = _conv2d_ref(fea, p["w2"], p["b2"])
    scale = p["gamma"] / jnp.sqrt(p["rvar"] + eps)
    t = t * scale[None, :, None, None] + (p["beta"] - p["rmean"] * scale)[None, :, None, None]
    fea = fea + jax.nn.relu(t)
    fea = jax.nn.sigmoid(_conv2d_ref(fea, p["w3"], p["b3"]))
    i = jnp.clip(fea + x, 0.0001, 1.0)
    r = jnp.clip(x / i, 0.0, 1.0)
    return i, r


# ------------------------------------------------------------------
if __name__ == "__main__":
    key = jax.random.PRNGKey(0)
    k_param, k_input = jax.random.split(key)

    params = init_params(k_param)
    w_all, b_all = pack_params(params)

    # Finetunemodel expects 3-channel images; small NCHW input in (0, 1].
    x = jax.random.uniform(k_input, (2, 3, 16, 16), jnp.float32,
                           minval=0.05, maxval=1.0)

    forward = jax.jit(finetune_pallas)
    i_out, r_out = jax.block_until_ready(forward(w_all, b_all, x))

    # Shape / finiteness checks.
    assert i_out.shape == x.shape and r_out.shape == x.shape
    assert bool(jnp.all(jnp.isfinite(i_out))) and bool(jnp.all(jnp.isfinite(r_out)))

    # Numerical check against the un-fused pure-JAX reference.
    i_exp, r_exp = finetune_ref(params, x)
    assert bool(jnp.allclose(i_out, i_exp, atol=5e-3, rtol=5e-3))
    assert bool(jnp.allclose(r_out, r_exp, atol=5e-3, rtol=5e-3))

    print("KERNEL_OK")
</pallas_src>

<mosaic_0001>
module attributes {stable_mosaic.version = 11 : i64} {
  func.func @_finetune_kernel(%arg0: i32, %arg1: memref<3x256xf32, #tpu.memory_space<vmem>>, %arg2: memref<3x3x27xbf16, #tpu.memory_space<vmem>>, %arg3: memref<3x3x1xf32, #tpu.memory_space<vmem>>, %arg4: memref<3x256xf32, #tpu.memory_space<vmem>>, %arg5: memref<3x256xf32, #tpu.memory_space<vmem>>) attributes {dimension_semantics = [#tpu.dimension_semantics<parallel>], iteration_bounds = array<i64: 2>, scalar_prefetch = 0 : i64, scratch_operands = 0 : i64, tpu.core_type = #tpu.core_type<tc>, window_params = [{transform_indices = @transform_0, window_bounds = array<i64: 3, 256>}, {pipeline_mode = #tpu.pipeline_mode<synchronous>, transform_indices = @transform_1, window_bounds = array<i64: 3, 3, 27>}, {pipeline_mode = #tpu.pipeline_mode<synchronous>, transform_indices = @transform_2, window_bounds = array<i64: 3, 3, 1>}, {transform_indices = @transform_3, window_bounds = array<i64: 3, 256>}, {transform_indices = @transform_4, window_bounds = array<i64: 3, 256>}]} {
    %c0 = arith.constant 0 : index
    %c0_0 = arith.constant 0 : index
    %0 = vector.load %arg1[%c0, %c0_0] : memref<3x256xf32, #tpu.memory_space<vmem>>, vector<3x256xf32>
    %c0_1 = arith.constant 0 : index
    %c0_2 = arith.constant 0 : index
    %c0_3 = arith.constant 0 : index
    %1 = vector.load %arg2[%c0_1, %c0_2, %c0_3] : memref<3x3x27xbf16, #tpu.memory_space<vmem>>, vector<3x3x27xbf16>
    %c0_4 = arith.constant 0 : index
    %c0_5 = arith.constant 0 : index
    %c0_6 = arith.constant 0 : index
    %2 = vector.load %arg3[%c0_4, %c0_5, %c0_6] : memref<3x3x1xf32, #tpu.memory_space<vmem>>, vector<3x3x1xf32>
    %3 = tpu.iota {dimensions = array<i32: 1>} : vector<1x256xi32>
    %4 = arith.sitofp %3 : vector<1x256xi32> to vector<1x256xf32>
    %cst = arith.constant 5.000000e-01 : f32
    %5 = vector.broadcast %cst : f32 to vector<1x256xf32>
    %6 = arith.addf %4, %5 : vector<1x256xf32>
    %cst_7 = arith.constant 2.560000e+02 : f32
    %7 = vector.broadcast %cst_7 : f32 to vector<1x256xf32>
    %8 = arith.divf %6, %7 : vector<1x256xf32>
    %9 = math.floor %8 : vector<1x256xf32>
    %cst_8 = arith.constant 2.560000e+02 : f32
    %10 = vector.broadcast %cst_8 : f32 to vector<1x256xf32>
    %11 = arith.mulf %9, %10 : vector<1x256xf32>
    %12 = arith.subf %4, %11 : vector<1x256xf32>
    %cst_9 = arith.constant 5.000000e-01 : f32
    %13 = vector.broadcast %cst_9 : f32 to vector<1x256xf32>
    %14 = arith.addf %12, %13 : vector<1x256xf32>
    %cst_10 = arith.constant 1.600000e+01 : f32
    %15 = vector.broadcast %cst_10 : f32 to vector<1x256xf32>
    %16 = arith.divf %14, %15 : vector<1x256xf32>
    %17 = math.floor %16 : vector<1x256xf32>
    %cst_11 = arith.constant 1.600000e+01 : f32
    %18 = vector.broadcast %cst_11 : f32 to vector<1x256xf32>
    %19 = arith.mulf %17, %18 : vector<1x256xf32>
    %20 = arith.subf %12, %19 : vector<1x256xf32>
    %cst_12 = arith.constant 1.000000e+00 : f32
    %21 = vector.broadcast %cst_12 : f32 to vector<1x256xf32>
    %22 = arith.cmpf oge, %17, %21 : vector<1x256xf32>
    %23 = arith.extui %22 : vector<1x256xi1> to vector<1x256xi32>
    %24 = arith.sitofp %23 : vector<1x256xi32> to vector<1x256xf32>
    %cst_13 = arith.constant 1.400000e+01 : f32
    %25 = vector.broadcast %cst_13 : f32 to vector<1x256xf32>
    %26 = arith.cmpf ole, %17, %25 : vector<1x256xf32>
    %27 = arith.extui %26 : vector<1x256xi1> to vector<1x256xi32>
    %28 = arith.sitofp %27 : vector<1x256xi32> to vector<1x256xf32>
    %cst_14 = arith.constant 1.000000e+00 : f32
    %29 = vector.broadcast %cst_14 : f32 to vector<1x256xf32>
    %30 = arith.cmpf oge, %20, %29 : vector<1x256xf32>
    %31 = arith.extui %30 : vector<1x256xi1> to vector<1x256xi32>
    %32 = arith.sitofp %31 : vector<1x256xi32> to vector<1x256xf32>
    %cst_15 = arith.constant 1.400000e+01 : f32
    %33 = vector.broadcast %cst_15 : f32 to vector<1x256xf32>
    %34 = arith.cmpf ole, %20, %33 : vector<1x256xf32>
    %35 = arith.extui %34 : vector<1x256xi1> to vector<1x256xi32>
    %36 = arith.sitofp %35 : vector<1x256xi32> to vector<1x256xf32>
    %37 = arith.mulf %24, %32 : vector<1x256xf32>
    %38 = arith.mulf %24, %36 : vector<1x256xf32>
    %39 = arith.mulf %28, %32 : vector<1x256xf32>
    %40 = arith.mulf %28, %36 : vector<1x256xf32>
    %c17_i32 = arith.constant 17 : i32
    %41 = tpu.dynamic_rotate %0 by %c17_i32 dim 1 : vector<3x256xf32>, i32 -> vector<3x256xf32>
    %42 = vector.broadcast %37 : vector<1x256xf32> to vector<3x256xf32>
    %43 = arith.mulf %41, %42 : vector<3x256xf32>
    %c16_i32 = arith.constant 16 : i32
    %44 = tpu.dynamic_rotate %0 by %c16_i32 dim 1 : vector<3x256xf32>, i32 -> vector<3x256xf32>
    %45 = vector.broadcast %24 : vector<1x256xf32> to vector<3x256xf32>
    %46 = arith.mulf %44, %45 : vector<3x256xf32>
    %c15_i32 = arith.constant 15 : i32
    %47 = tpu.dynamic_rotate %0 by %c15_i32 dim 1 : vector<3x256xf32>, i32 -> vector<3x256xf32>
    %48 = vector.broadcast %38 : vector<1x256xf32> to vector<3x256xf32>
    %49 = arith.mulf %47, %48 : vector<3x256xf32>
    %c1_i32 = arith.constant 1 : i32
    %50 = tpu.dynamic_rotate %0 by %c1_i32 dim 1 : vector<3x256xf32>, i32 -> vector<3x256xf32>
    %51 = vector.broadcast %32 : vector<1x256xf32> to vector<3x256xf32>
    %52 = arith.mulf %50, %51 : vector<3x256xf32>
    %c255_i32 = arith.constant 255 : i32
    %53 = tpu.dynamic_rotate %0 by %c255_i32 dim 1 : vector<3x256xf32>, i32 -> vector<3x256xf32>
    %54 = vector.broadcast %36 : vector<1x256xf32> to vector<3x256xf32>
    %55 = arith.mulf %53, %54 : vector<3x256xf32>
    %c241_i32 = arith.constant 241 : i32
    %56 = tpu.dynamic_rotate %0 by %c241_i32 dim 1 : vector<3x256xf32>, i32 -> vector<3x256xf32>
    %57 = vector.broadcast %39 : vector<1x256xf32> to vector<3x256xf32>
    %58 = arith.mulf %56, %57 : vector<3x256xf32>
    %c240_i32 = arith.constant 240 : i32
    %59 = tpu.dynamic_rotate %0 by %c240_i32 dim 1 : vector<3x256xf32>, i32 -> vector<3x256xf32>
    %60 = vector.broadcast %28 : vector<1x256xf32> to vector<3x256xf32>
    %61 = arith.mulf %59, %60 : vector<3x256xf32>
    %c239_i32 = arith.constant 239 : i32
    %62 = tpu.dynamic_rotate %0 by %c239_i32 dim 1 : vector<3x256xf32>, i32 -> vector<3x256xf32>
    %63 = vector.broadcast %40 : vector<1x256xf32> to vector<3x256xf32>
    %64 = arith.mulf %62, %63 : vector<3x256xf32>
    %65 = tpu.concatenate %43, %46, %49, %52, %0, %55, %58, %61, %64 in 0 : vector<3x256xf32>, vector<3x256xf32>, vector<3x256xf32>, vector<3x256xf32>, vector<3x256xf32>, vector<3x256xf32>, vector<3x256xf32>, vector<3x256xf32>, vector<3x256xf32> -> vector<27x256xf32>
    %66 = arith.truncf %65 : vector<27x256xf32> to vector<27x256xbf16>
    %67 = vector.extract_strided_slice %1 {offsets = [0, 0, 0], sizes = [1, 3, 27], strides = [1, 1, 1]} : vector<3x3x27xbf16> to vector<1x3x27xbf16>
    %68 = vector.shape_cast %67 : vector<1x3x27xbf16> to vector<3x27xbf16>
    %cst_16 = arith.constant dense<0.000000e+00> : vector<3x256xf32>
    %69 = tpu.matmul %68, %66, %cst_16 {dimension_numbers = #tpu.dot_dimension_numbers<[1], [0], [0], [1], [0, 0, 1, 1], [], []>} : vector<3x27xbf16>, vector<27x256xbf16>, vector<3x256xf32> -> vector<3x256xf32>
    %70 = vector.extract_strided_slice %2 {offsets = [0, 0, 0], sizes = [1, 3, 1], strides = [1, 1, 1]} : vector<3x3x1xf32> to vector<1x3x1xf32>
    %71 = vector.shape_cast %70 : vector<1x3x1xf32> to vector<3x1xf32>
    %72 = vector.broadcast %71 : vector<3x1xf32> to vector<3x256xf32>
    %73 = arith.addf %69, %72 : vector<3x256xf32>
    %cst_17 = arith.constant 0.000000e+00 : f32
    %74 = vector.broadcast %cst_17 : f32 to vector<3x256xf32>
    %75 = arith.maximumf %73, %74 : vector<3x256xf32>
    %c17_i32_18 = arith.constant 17 : i32
    %76 = tpu.dynamic_rotate %75 by %c17_i32_18 dim 1 : vector<3x256xf32>, i32 -> vector<3x256xf32>
    %77 = vector.broadcast %37 : vector<1x256xf32> to vector<3x256xf32>
    %78 = arith.mulf %76, %77 : vector<3x256xf32>
    %c16_i32_19 = arith.constant 16 : i32
    %79 = tpu.dynamic_rotate %75 by %c16_i32_19 dim 1 : vector<3x256xf32>, i32 -> vector<3x256xf32>
    %80 = vector.broadcast %24 : vector<1x256xf32> to vector<3x256xf32>
    %81 = arith.mulf %79, %80 : vector<3x256xf32>
    %c15_i32_20 = arith.constant 15 : i32
    %82 = tpu.dynamic_rotate %75 by %c15_i32_20 dim 1 : vector<3x256xf32>, i32 -> vector<3x256xf32>
    %83 = vector.broadcast %38 : vector<1x256xf32> to vector<3x256xf32>
    %84 = arith.mulf %82, %83 : vector<3x256xf32>
    %c1_i32_21 = arith.constant 1 : i32
    %85 = tpu.dynamic_rotate %75 by %c1_i32_21 dim 1 : vector<3x256xf32>, i32 -> vector<3x256xf32>
    %86 = vector.broadcast %32 : vector<1x256xf32> to vector<3x256xf32>
    %87 = arith.mulf %85, %86 : vector<3x256xf32>
    %c255_i32_22 = arith.constant 255 : i32
    %88 = tpu.dynamic_rotate %75 by %c255_i32_22 dim 1 : vector<3x256xf32>, i32 -> vector<3x256xf32>
    %89 = vector.broadcast %36 : vector<1x256xf32> to vector<3x256xf32>
    %90 = arith.mulf %88, %89 : vector<3x256xf32>
    %c241_i32_23 = arith.constant 241 : i32
    %91 = tpu.dynamic_rotate %75 by %c241_i32_23 dim 1 : vector<3x256xf32>, i32 -> vector<3x256xf32>
    %92 = vector.broadcast %39 : vector<1x256xf32> to vector<3x256xf32>
    %93 = arith.mulf %91, %92 : vector<3x256xf32>
    %c240_i32_24 = arith.constant 240 : i32
    %94 = tpu.dynamic_rotate %75 by %c240_i32_24 dim 1 : vector<3x256xf32>, i32 -> vector<3x256xf32>
    %95 = vector.broadcast %28 : vector<1x256xf32> to vector<3x256xf32>
    %96 = arith.mulf %94, %95 : vector<3x256xf32>
    %c239_i32_25 = arith.constant 239 : i32
    %97 = tpu.dynamic_rotate %75 by %c239_i32_25 dim 1 : vector<3x256xf32>, i32 -> vector<3x256xf32>
    %98 = vector.broadcast %40 : vector<1x256xf32> to vector<3x256xf32>
    %99 = arith.mulf %97, %98 : vector<3x256xf32>
    %100 = tpu.concatenate %78, %81, %84, %87, %75, %90, %93, %96, %99 in 0 : vector<3x256xf32>, vector<3x256xf32>, vector<3x256xf32>, vector<3x256xf32>, vector<3x256xf32>, vector<3x256xf32>, vector<3x256xf32>, vector<3x256xf32>, vector<3x256xf32> -> vector<27x256xf32>
    %101 = arith.truncf %100 : vector<27x256xf32> to vector<27x256xbf16>
    %102 = vector.extract_strided_slice %1 {offsets = [1, 0, 0], sizes = [1, 3, 27], strides = [1, 1, 1]} : vector<3x3x27xbf16> to vector<1x3x27xbf16>
    %103 = vector.shape_cast %102 : vector<1x3x27xbf16> to vector<3x27xbf16>
    %cst_26 = arith.constant dense<0.000000e+00> : vector<3x256xf32>
    %104 = tpu.matmul %103, %101, %cst_26 {dimension_numbers = #tpu.dot_dimension_numbers<[1], [0], [0], [1], [0, 0, 1, 1], [], []>} : vector<3x27xbf16>, vector<27x256xbf16>, vector<3x256xf32> -> vector<3x256xf32>
    %105 = vector.extract_strided_slice %2 {offsets = [1, 0, 0], sizes = [1, 3, 1], strides = [1, 1, 1]} : vector<3x3x1xf32> to vector<1x3x1xf32>
    %106 = vector.shape_cast %105 : vector<1x3x1xf32> to vector<3x1xf32>
    %107 = vector.broadcast %106 : vector<3x1xf32> to vector<3x256xf32>
    %108 = arith.addf %104, %107 : vector<3x256xf32>
    %cst_27 = arith.constant 0.000000e+00 : f32
    %109 = vector.broadcast %cst_27 : f32 to vector<3x256xf32>
    %110 = arith.maximumf %108, %109 : vector<3x256xf32>
    %111 = arith.addf %75, %110 : vector<3x256xf32>
    %c17_i32_28 = arith.constant 17 : i32
    %112 = tpu.dynamic_rotate %111 by %c17_i32_28 dim 1 : vector<3x256xf32>, i32 -> vector<3x256xf32>
    %113 = vector.broadcast %37 : vector<1x256xf32> to vector<3x256xf32>
    %114 = arith.mulf %112, %113 : vector<3x256xf32>
    %c16_i32_29 = arith.constant 16 : i32
    %115 = tpu.dynamic_rotate %111 by %c16_i32_29 dim 1 : vector<3x256xf32>, i32 -> vector<3x256xf32>
    %116 = vector.broadcast %24 : vector<1x256xf32> to vector<3x256xf32>
    %117 = arith.mulf %115, %116 : vector<3x256xf32>
    %c15_i32_30 = arith.constant 15 : i32
    %118 = tpu.dynamic_rotate %111 by %c15_i32_30 dim 1 : vector<3x256xf32>, i32 -> vector<3x256xf32>
    %119 = vector.broadcast %38 : vector<1x256xf32> to vector<3x256xf32>
    %120 = arith.mulf %118, %119 : vector<3x256xf32>
    %c1_i32_31 = arith.constant 1 : i32
    %121 = tpu.dynamic_rotate %111 by %c1_i32_31 dim 1 : vector<3x256xf32>, i32 -> vector<3x256xf32>
    %122 = vector.broadcast %32 : vector<1x256xf32> to vector<3x256xf32>
    %123 = arith.mulf %121, %122 : vector<3x256xf32>
    %c255_i32_32 = arith.constant 255 : i32
    %124 = tpu.dynamic_rotate %111 by %c255_i32_32 dim 1 : vector<3x256xf32>, i32 -> vector<3x256xf32>
    %125 = vector.broadcast %36 : vector<1x256xf32> to vector<3x256xf32>
    %126 = arith.mulf %124, %125 : vector<3x256xf32>
    %c241_i32_33 = arith.constant 241 : i32
    %127 = tpu.dynamic_rotate %111 by %c241_i32_33 dim 1 : vector<3x256xf32>, i32 -> vector<3x256xf32>
    %128 = vector.broadcast %39 : vector<1x256xf32> to vector<3x256xf32>
    %129 = arith.mulf %127, %128 : vector<3x256xf32>
    %c240_i32_34 = arith.constant 240 : i32
    %130 = tpu.dynamic_rotate %111 by %c240_i32_34 dim 1 : vector<3x256xf32>, i32 -> vector<3x256xf32>
    %131 = vector.broadcast %28 : vector<1x256xf32> to vector<3x256xf32>
    %132 = arith.mulf %130, %131 : vector<3x256xf32>
    %c239_i32_35 = arith.constant 239 : i32
    %133 = tpu.dynamic_rotate %111 by %c239_i32_35 dim 1 : vector<3x256xf32>, i32 -> vector<3x256xf32>
    %134 = vector.broadcast %40 : vector<1x256xf32> to vector<3x256xf32>
    %135 = arith.mulf %133, %134 : vector<3x256xf32>
    %136 = tpu.concatenate %114, %117, %120, %123, %111, %126, %129, %132, %135 in 0 : vector<3x256xf32>, vector<3x256xf32>, vector<3x256xf32>, vector<3x256xf32>, vector<3x256xf32>, vector<3x256xf32>, vector<3x256xf32>, vector<3x256xf32>, vector<3x256xf32> -> vector<27x256xf32>
    %137 = arith.truncf %136 : vector<27x256xf32> to vector<27x256xbf16>
    %138 = vector.extract_strided_slice %1 {offsets = [2, 0, 0], sizes = [1, 3, 27], strides = [1, 1, 1]} : vector<3x3x27xbf16> to vector<1x3x27xbf16>
    %139 = vector.shape_cast %138 : vector<1x3x27xbf16> to vector<3x27xbf16>
    %cst_36 = arith.constant dense<0.000000e+00> : vector<3x256xf32>
    %140 = tpu.matmul %139, %137, %cst_36 {dimension_numbers = #tpu.dot_dimension_numbers<[1], [0], [0], [1], [0, 0, 1, 1], [], []>} : vector<3x27xbf16>, vector<27x256xbf16>, vector<3x256xf32> -> vector<3x256xf32>
    %141 = vector.extract_strided_slice %2 {offsets = [2, 0, 0], sizes = [1, 3, 1], strides = [1, 1, 1]} : vector<3x3x1xf32> to vector<1x3x1xf32>
    %142 = vector.shape_cast %141 : vector<1x3x1xf32> to vector<3x1xf32>
    %143 = vector.broadcast %142 : vector<3x1xf32> to vector<3x256xf32>
    %144 = arith.addf %140, %143 : vector<3x256xf32>
    %145 = arith.negf %144 : vector<3x256xf32>
    %146 = math.exp %145 : vector<3x256xf32>
    %cst_37 = arith.constant 1.000000e+00 : f32
    %147 = vector.broadcast %cst_37 : f32 to vector<3x256xf32>
    %148 = arith.addf %147, %146 : vector<3x256xf32>
    %149 = arith.divf %147, %148 : vector<3x256xf32>
    %150 = arith.addf %149, %0 : vector<3x256xf32>
    %cst_38 = arith.constant 9.99999974E-5 : f32
    %cst_39 = arith.constant 1.000000e+00 : f32
    %151 = vector.broadcast %cst_38 : f32 to vector<3x256xf32>
    %152 = arith.maximumf %151, %150 : vector<3x256xf32>
    %153 = vector.broadcast %cst_39 : f32 to vector<3x256xf32>
    %154 = arith.minimumf %153, %152 : vector<3x256xf32>
    %c0_40 = arith.constant 0 : index
    %c0_41 = arith.constant 0 : index
    %155 = vector.load %arg4[%c0_40, %c0_41] : memref<3x256xf32, #tpu.memory_space<vmem>>, vector<3x256xf32>
    tpu.vector_store %arg4[%c0_40, %c0_41], %154 {strides = array<i32>} : memref<3x256xf32, #tpu.memory_space<vmem>>, vector<3x256xf32>,
    %156 = tpu.reciprocal %154 {approx = true} : vector<3x256xf32> -> vector<3x256xf32>
    %157 = arith.mulf %0, %156 : vector<3x256xf32>
    %cst_42 = arith.constant 0.000000e+00 : f32
    %cst_43 = arith.constant 1.000000e+00 : f32
    %158 = vector.broadcast %cst_42 : f32 to vector<3x256xf32>
    %159 = arith.maximumf %158, %157 : vector<3x256xf32>
    %160 = vector.broadcast %cst_43 : f32 to vector<3x256xf32>
    %161 = arith.minimumf %160, %159 : vector<3x256xf32>
    %c0_44 = arith.constant 0 : index
    %c0_45 = arith.constant 0 : index
    %162 = vector.load %arg5[%c0_44, %c0_45] : memref<3x256xf32, #tpu.memory_space<vmem>>, vector<3x256xf32>
    tpu.vector_store %arg5[%c0_44, %c0_45], %161 {strides = array<i32>} : memref<3x256xf32, #tpu.memory_space<vmem>>, vector<3x256xf32>,
    return
  }
  func.func @transform_0(%arg0: i32) -> (i32, i32) {
    %c0_i32 = arith.constant 0 : i32
    %c0_i32_0 = arith.constant 0 : i32
    return %c0_i32, %arg0 : i32, i32
  }
  func.func @transform_1(%arg0: i32) -> (i32, i32, i32) {
    %c0_i32 = arith.constant 0 : i32
    %c0_i32_0 = arith.constant 0 : i32
    %c0_i32_1 = arith.constant 0 : i32
    %c0_i32_2 = arith.constant 0 : i32
    return %c0_i32, %c0_i32_0, %c0_i32_1 : i32, i32, i32
  }
  func.func @transform_2(%arg0: i32) -> (i32, i32, i32) {
    %c0_i32 = arith.constant 0 : i32
    %c0_i32_0 = arith.constant 0 : i32
    %c0_i32_1 = arith.constant 0 : i32
    %c0_i32_2 = arith.constant 0 : i32
    return %c0_i32, %c0_i32_0, %c0_i32_1 : i32, i32, i32
  }
  func.func @transform_3(%arg0: i32) -> (i32, i32) {
    %c0_i32 = arith.constant 0 : i32
    %c0_i32_0 = arith.constant 0 : i32
    return %c0_i32, %arg0 : i32, i32
  }
  func.func @transform_4(%arg0: i32) -> (i32, i32) {
    %c0_i32 = arith.constant 0 : i32
    %c0_i32_0 = arith.constant 0 : i32
    return %c0_i32, %arg0 : i32, i32
  }
}

</mosaic_0001>

<llo_original>
// kernel: finetune_pallas.1
$region0: #{finetune_pallas.1}
  #allocation0 [shape = 'u32[]', space=smem, size = 0x4, offset = 0x4, fixed_abs, tag = 'smem constant byte address 0x4 - core index']
  #allocation1 [shape = 'u32[144,128]{1,0:T(1,128)}', space=vmem, size = 0x12000, scoped, tag = 'internal scratch']
  %s0 = inlined_call_operand.vmem [shape: f32[3,512], index: 0, kind: input, shape index: {}]
  %s1 = inlined_call_operand.vmem [shape: bf16[3,3,27], index: 1, kind: input, shape index: {}]
  %s2 = inlined_call_operand.vmem [shape: f32[3,3,1], index: 2, kind: input, shape index: {}]
  %s3 = inlined_call_operand.vmem [shape: f32[3,512], index: 3, kind: output, shape index: {0}]
  %s4 = inlined_call_operand.vmem [shape: f32[3,512], index: 4, kind: output, shape index: {1}]
  %5 = xla_tuple %s3, %s4
  %s6 = sld [smem:[#allocation0]]
  $region53: #{finetune_pallas.1} parent=0
    _
  %s8 = ssub.s32 1, %s6
  %s9 = scalar_select 0, %s8, %s6
  loop: start=0, step=1, limit=4
  $region2: #{finetune_pallas.1} parent=0 // loop_pre_header
    _
  $region3: #{finetune_pallas.1} parent=0 // loop_header
    %s11 = sphi 0, %s15
    %p12 = scmp.ge.s32.totalorder %s11, 4
    %s21 = sphi 0, %s23
    %s24 = sphi 0, %s21
    %s25 = sphi 0, %s24
    %s41 = sphi 0, %s25
    %s45 = sphi 0, %s45
    %s47 = sphi 0, %s45
    %s48 = sphi 0, %s47
    %s62 = sphi 0, %s48
    %s66 = sphi 0, %s66
    %s68 = sphi 0, %s66
    %s69 = sphi 0, %s68
    %s83 = sphi 0, %s69
    %s89 = sphi 0, %s91
    %s92 = sphi 0, %s89
    %s93 = sphi 0, %s92
    %s109 = sphi 0, %s93
    %s115 = sphi 0, %s117
    %s118 = sphi 0, %s115
    %s119 = sphi 0, %s118
    %s135 = sphi 0, %s119
  $region4: #{finetune_pallas.1} parent=0 // loop_header_branch
    %14 = sbr.rel (%p12) target = $region8
  $region5: #{finetune_pallas.1} parent=0 // loop_body
    %s16 = ssub.s32 %s11, 1
    %s17 = ssub.s32 %s11, 2
    %s18 = sadd.s32 %s11, 1
    %s19 = ssub.s32 %s11, %s18
    %p20 = scmp.eq.s32.totalorder %s19, 0
    %s22 = sadd.s32 %s21, 1
    %s23 = scalar_select %p20, %s21, %s22
    %p26 = pneg %p20
    %p27 = scmp.eq.s32.totalorder %s11, 1
    %p28 = por %p26, %p27
    %p29 = scmp.ne.s32.totalorder %s21, %s24
    %p30 = scmp.eq.s32.totalorder %s11, 0
    %p31 = por %p29, %p30
    %p32 = scmp.ne.s32.totalorder %s21, %s24
    %p33 = scmp.eq.s32.totalorder %s16, 1
    %p34 = por %p32, %p33
    %p35 = scmp.ne.s32.totalorder %s24, %s25
    %p36 = scmp.eq.s32.totalorder %s16, 0
    %p37 = por %p35, %p36
    %p38 = scmp.ne.s32.totalorder %s24, %s25
    %p39 = scmp.eq.s32.totalorder %s17, 1
    %p40 = por %p38, %p39
    %p42 = scmp.ne.s32.totalorder %s25, %s41
    %p43 = scmp.eq.s32.totalorder %s17, 0
    %p44 = por %p42, %p43
    %s46 = sadd.s32 %s45, 1
    %p49 = scmp.eq.s32.totalorder %s11, 1
    %p50 = scmp.ne.s32.totalorder %s45, %s47
    %p51 = scmp.eq.s32.totalorder %s11, 0
    %p52 = por %p50, %p51
    %p53 = scmp.ne.s32.totalorder %s45, %s47
    %p54 = scmp.eq.s32.totalorder %s16, 1
    %p55 = por %p53, %p54
    %p56 = scmp.ne.s32.totalorder %s47, %s48
    %p57 = scmp.eq.s32.totalorder %s16, 0
    %p58 = por %p56, %p57
    %p59 = scmp.ne.s32.totalorder %s47, %s48
    %p60 = scmp.eq.s32.totalorder %s17, 1
    %p61 = por %p59, %p60
    %p63 = scmp.ne.s32.totalorder %s48, %s62
    %p64 = scmp.eq.s32.totalorder %s17, 0
    %p65 = por %p63, %p64
    %s67 = sadd.s32 %s66, 1
    %p70 = scmp.eq.s32.totalorder %s11, 1
    %p71 = scmp.ne.s32.totalorder %s66, %s68
    %p72 = scmp.eq.s32.totalorder %s11, 0
    %p73 = por %p71, %p72
    %p74 = scmp.ne.s32.totalorder %s66, %s68
    %p75 = scmp.eq.s32.totalorder %s16, 1
    %p76 = por %p74, %p75
    %p77 = scmp.ne.s32.totalorder %s68, %s69
    %p78 = scmp.eq.s32.totalorder %s16, 0
    %p79 = por %p77, %p78
    %p80 = scmp.ne.s32.totalorder %s68, %s69
    %p81 = scmp.eq.s32.totalorder %s17, 1
    %p82 = por %p80, %p81
    %p84 = scmp.ne.s32.totalorder %s69, %s83
    %p85 = scmp.eq.s32.totalorder %s17, 0
    %p86 = por %p84, %p85
    %s87 = ssub.s32 %s11, %s18
    %p88 = scmp.eq.s32.totalorder %s87, 0
    %s90 = sadd.s32 %s89, 1
    %s91 = scalar_select %p88, %s89, %s90
    %p94 = pneg %p88
    %p95 = scmp.eq.s32.totalorder %s11, 1
    %p96 = por %p94, %p95
    %p97 = scmp.ne.s32.totalorder %s89, %s92
    %p98 = scmp.eq.s32.totalorder %s11, 0
    %p99 = por %p97, %p98
    %p100 = scmp.ne.s32.totalorder %s89, %s92
    %p101 = scmp.eq.s32.totalorder %s16, 1
    %p102 = por %p100, %p101
    %p103 = scmp.ne.s32.totalorder %s92, %s93
    %p104 = scmp.eq.s32.totalorder %s16, 0
    %p105 = por %p103, %p104
    %p106 = scmp.ne.s32.totalorder %s92, %s93
    %p107 = scmp.eq.s32.totalorder %s17, 1
    %p108 = por %p106, %p107
    %p110 = scmp.ne.s32.totalorder %s93, %s109
    %p111 = scmp.eq.s32.totalorder %s17, 0
    %p112 = por %p110, %p111
    %s113 = ssub.s32 %s11, %s18
    %p114 = scmp.eq.s32.totalorder %s113, 0
    %s116 = sadd.s32 %s115, 1
    %s117 = scalar_select %p114, %s115, %s116
    %p120 = pneg %p114
    %p121 = scmp.eq.s32.totalorder %s11, 1
    %p122 = por %p120, %p121
    %p123 = scmp.ne.s32.totalorder %s115, %s118
    %p124 = scmp.eq.s32.totalorder %s11, 0
    %p125 = por %p123, %p124
    %p126 = scmp.ne.s32.totalorder %s115, %s118
    %p127 = scmp.eq.s32.totalorder %s16, 1
    %p128 = por %p126, %p127
    %p129 = scmp.ne.s32.totalorder %s118, %s119
    %p130 = scmp.eq.s32.totalorder %s16, 0
    %p131 = por %p129, %p130
    %p132 = scmp.ne.s32.totalorder %s118, %s119
    %p133 = scmp.eq.s32.totalorder %s17, 1
    %p134 = por %p132, %p133
    %p136 = scmp.ne.s32.totalorder %s119, %s135
    %p137 = scmp.eq.s32.totalorder %s17, 0
    %p138 = por %p136, %p137
    %p139 = scmp.le.s32.totalorder 1, %s11
    %p140 = scmp.lt.s32.totalorder %s11, 3
    %p141 = pnand %p139, %p140
    %p142 = pneg %p141
    // Predicated region
    $region9: #{finetune_pallas.1} parent=5 // pred_check
      _
    $region10: #{finetune_pallas.1} parent=5 // pred_check_branch
      %144 = sbr.rel (%p141) target = $region12
    $region11: #{finetune_pallas.1} parent=5 // pred_region
      %s145 = ssub.s32 %s11, 1
      // Predicated region
      $region13: #{finetune_pallas.1} parent=11 // pred_check
        %p146 = pneg %p58
      $region14: #{finetune_pallas.1} parent=11 // pred_check_branch
        %148 = sbr.rel (%p146) target = $region16
      $region15: #{finetune_pallas.1} parent=11 // pred_region
        _
      $region16: #{finetune_pallas.1} parent=11 // pred_fallthru
        _
      // Predicated region
      $region17: #{finetune_pallas.1} parent=11 // pred_check
        %p149 = pneg %p79
      $region18: #{finetune_pallas.1} parent=11 // pred_check_branch
        %151 = sbr.rel (%p149) target = $region20
      $region19: #{finetune_pallas.1} parent=11 // pred_region
        _
      $region20: #{finetune_pallas.1} parent=11 // pred_fallthru
        _
    $region12: #{finetune_pallas.1} parent=5 // pred_fallthru
      _
    %p152 = scmp.lt.s32.totalorder %s11, 2
    // Predicated region
    $region21: #{finetune_pallas.1} parent=5 // pred_check
      %p153 = pneg %p152
    $region22: #{finetune_pallas.1} parent=5 // pred_check_branch
      %155 = sbr.rel (%p153) target = $region24
    $region23: #{finetune_pallas.1} parent=5 // pred_region
      // Predicated region
      $region25: #{finetune_pallas.1} parent=23 // pred_check
        %p156 = pneg %p31
      $region26: #{finetune_pallas.1} parent=23 // pred_check_branch
        %158 = sbr.rel (%p156) target = $region28
      $region27: #{finetune_pallas.1} parent=23 // pred_region
        %s159 = smul.u32 2, %s11
        %p160 = scmp.lt.s32.totalorder %s159, 3
        %s161 = scalar_select %p160, %s159, 3
        %s162 = smul.addr %s161, 4
        %s163 = scalar_lea.vmem %s0, %s162
        %s164 = smul.u32 2, %s11
      $region28: #{finetune_pallas.1} parent=23 // pred_fallthru
        _
    $region24: #{finetune_pallas.1} parent=5 // pred_fallthru
      _
    %p165 = scmp.le.s32.totalorder 1, %s11
    %p166 = scmp.lt.s32.totalorder %s11, 3
    %p167 = pnand %p165, %p166
    %p168 = pneg %p167
    // Predicated region
    $region29: #{finetune_pallas.1} parent=5 // pred_check
      _
    $region30: #{finetune_pallas.1} parent=5 // pred_check_branch
      %170 = sbr.rel (%p167) target = $region32
    $region31: #{finetune_pallas.1} parent=5 // pred_region
      %s171 = ssub.s32 %s11, 1
      %s172 = smul.u32 2, %s16
      %p173 = scmp.lt.s32.totalorder %s172, 3
      %s174 = scalar_select %p173, %s172, 3
      %s175 = smul.addr %s174, 4
      %s176 = scalar_lea.vmem %s0, %s175
      %p177 = pneg %p37
      %p178 = pneg %p34
      %p179 = pneg %p58
      %p180 = pneg %p55
      %p181 = pneg %p79
      %p182 = pneg %p76
      %p183 = pneg %p105
      %p184 = pneg %p102
      %s185 = smul.u32 2, %s16
      %p186 = scmp.lt.s32.totalorder %s185, 3
      %s187 = scalar_select %p186, %s185, 3
      %s188 = smul.addr %s187, 4
      %s189 = scalar_lea.vmem %s3, %s188
      %p190 = pneg %p131
      %p191 = pneg %p128
      %s192 = smul.u32 2, %s16
      %p193 = scmp.lt.s32.totalorder %s192, 3
      %s194 = scalar_select %p193, %s192, 3
      %s195 = smul.addr %s194, 4
      %s196 = scalar_lea.vmem %s4, %s195
      %s197 = smul.u32 2, %s16
      %p198 = scmp.lt.s32.totalorder %s197, 3
      %s199 = scalar_select %p198, %s197, 3
      %s200 = smul.addr %s199, 4
      %s201 = scalar_lea.vmem %s0, %s200
      %s202 = smul.u32 2, %s16
      %s203 = smul.u32 2, %s16
      %p204 = scmp.lt.s32.totalorder %s203, 3
      %s205 = scalar_select %p204, %s203, 3
      %s206 = smul.addr %s205, 4
      %s207 = scalar_lea.vmem %s3, %s206
      %s208 = smul.u32 2, %s16
      %s209 = smul.u32 2, %s16
      %p210 = scmp.lt.s32.totalorder %s209, 3
      %s211 = scalar_select %p210, %s209, 3
      %s212 = smul.addr %s211, 4
      %s213 = scalar_lea.vmem %s4, %s212
      %s214 = smul.u32 2, %s16
      %v216 = vld [vmem:[%s201] sm:$0x77]
      %v217 = vld [vmem:[%s1] sm:$0x3]
      %v218 = vld [vmem:[%s1 + $0x2] sm:$0x3]
      %v219 = vld [vmem:[%s1 + $0x4] sm:$0x3]
      %v220 = vld [vmem:[%s2] sm:$0x7]
      %v221 = vld [vmem:[%s2 + $0x4] sm:$0x7]
      %v222 = vld [vmem:[%s2 + $0x8] sm:$0x7]
      %v223 = vlaneseq
      %v224 = vand.u32 %v223, 127
      %v225 = vadd.s32 %v224, 128
      %v226 = vcvt.s32.f32 %v224
      %v227 = vcvt.s32.f32 %v225
      %v228 = vadd.f32 %v226, 0.5
      %v229 = vadd.f32 %v227, 0.5
      %v230 = vrcp.pop 256.0
      %v231 = vmul.f32 %v228, %v230
      %v232 = vmul.f32 %v229, %v230
      %v233 = vfloor.f32 %v231
      %v234 = vfloor.f32 %v232
      %v235 = vmul.f32 %v233, 256.0
      %v236 = vmul.f32 %v234, 256.0
      %v237 = vsub.f32 %v226, %v235
      %v238 = vsub.f32 %v227, %v236
      %v239 = vadd.f32 %v237, 0.5
      %v240 = vadd.f32 %v238, 0.5
      %v241 = vrcp.pop 16.0
      %v242 = vmul.f32 %v239, %v241
      %v243 = vmul.f32 %v240, %v241
      %v244 = vfloor.f32 %v242
      %v245 = vfloor.f32 %v243
      %v246 = vmul.f32 %v244, 16.0
      %v247 = vmul.f32 %v245, 16.0
      %v248 = vsub.f32 %v237, %v246
      %v249 = vsub.f32 %v238, %v247
      %vm250 = vcmp.ge.f32.partialorder %v244, 1.0
      %vm251 = vcmp.ge.f32.partialorder %v245, 1.0
      %v252 = vsel %vm250, 1, 0
      %v253 = vsel %vm251, 1, 0
      %v254 = vcvt.s32.f32 %v252
      %v255 = vcvt.s32.f32 %v253
      %vm256 = vcmp.le.f32.partialorder %v244, 14.0
      %vm257 = vcmp.le.f32.partialorder %v245, 14.0
      %v258 = vsel %vm256, 1, 0
      %v259 = vsel %vm257, 1, 0
      %v260 = vcvt.s32.f32 %v258
      %v261 = vcvt.s32.f32 %v259
      %vm262 = vcmp.ge.f32.partialorder %v248, 1.0
      %vm263 = vcmp.ge.f32.partialorder %v249, 1.0
      %v264 = vsel %vm262, 1, 0
      %v265 = vsel %vm263, 1, 0
      %v266 = vcvt.s32.f32 %v264
      %v267 = vcvt.s32.f32 %v265
      %vm268 = vcmp.le.f32.partialorder %v248, 14.0
      %vm269 = vcmp.le.f32.partialorder %v249, 14.0
      %v270 = vsel %vm268, 1, 0
      %v271 = vsel %vm269, 1, 0
      %v272 = vcvt.s32.f32 %v270
      %v273 = vcvt.s32.f32 %v271
      %v274 = vmul.f32 %v254, %v266
      %v275 = vmul.f32 %v255, %v267
      %v276 = vmul.f32 %v254, %v272
      %v277 = vmul.f32 %v255, %v273
      %v278 = vmul.f32 %v260, %v266
      %v279 = vmul.f32 %v261, %v267
      %v280 = vmul.f32 %v260, %v272
      %v281 = vmul.f32 %v261, %v273
      %v283 = vcombine.high %v216, %v216
      %285 = vrot.lane.b32.xlu0 %v216, 17
      %v286 = vpop.permute.xlu0 %285
      %287 = vrot.lane.b32.xlu0 %v283, 17
      %v288 = vpop.permute.xlu0 %287
      %vm289 = vcmp.lt.s32.totalorder %v224, 17
      %v290 = vsel %vm289, %v286, %v288
      %v291 = vsel %vm289, %v288, %v286
      %v292 = vmul.f32 %v291, %v274
      %v293 = vmul.f32 %v290, %v275
      %294 = vrot.lane.b32.xlu0 %v216, 16
      %v295 = vpop.permute.xlu0 %294
      %296 = vrot.lane.b32.xlu0 %v283, 16
      %v297 = vpop.permute.xlu0 %296
      %vm298 = vcmp.lt.s32.totalorder %v224, 16
      %v299 = vsel %vm298, %v295, %v297
      %v300 = vsel %vm298, %v297, %v295
      %v301 = vmul.f32 %v300, %v254
      %v302 = vmul.f32 %v299, %v255
      %303 = vrot.lane.b32.xlu0 %v216, 15
      %v304 = vpop.permute.xlu0 %303
      %305 = vrot.lane.b32.xlu0 %v283, 15
      %v306 = vpop.permute.xlu0 %305
      %vm307 = vcmp.lt.s32.totalorder %v224, 15
      %v308 = vsel %vm307, %v304, %v306
      %v309 = vsel %vm307, %v306, %v304
      %v310 = vmul.f32 %v309, %v276
      %v311 = vmul.f32 %v308, %v277
      %312 = vrot.lane.b32.xlu0 %v216, 1
      %v313 = vpop.permute.xlu0 %312
      %314 = vrot.lane.b32.xlu0 %v283, 1
      %v315 = vpop.permute.xlu0 %314
      %vm316 = vcmp.lt.s32.totalorder %v224, 1
      %v317 = vsel %vm316, %v313, %v315
      %v318 = vsel %vm316, %v315, %v313
      %v319 = vmul.f32 %v318, %v266
      %v320 = vmul.f32 %v317, %v267
      %321 = vrot.lane.b32.xlu0 %v216, 127
      %v322 = vpop.permute.xlu0 %321
      %323 = vrot.lane.b32.xlu0 %v283, 127
      %v324 = vpop.permute.xlu0 %323
      %vm325 = vcmp.lt.s32.totalorder %v224, 127
      %v326 = vsel %vm325, %v322, %v324
      %v327 = vsel %vm325, %v324, %v322
      %v328 = vmul.f32 %v326, %v272
      %v329 = vmul.f32 %v327, %v273
      %330 = vrot.lane.b32.xlu0 %v216, 113
      %v331 = vpop.permute.xlu0 %330
      %332 = vrot.lane.b32.xlu0 %v283, 113
      %v333 = vpop.permute.xlu0 %332
      %vm334 = vcmp.lt.s32.totalorder %v224, 113
      %v335 = vsel %vm334, %v331, %v333
      %v336 = vsel %vm334, %v333, %v331
      %v337 = vmul.f32 %v335, %v278
      %v338 = vmul.f32 %v336, %v279
      %339 = vrot.lane.b32.xlu0 %v216, 112
      %v340 = vpop.permute.xlu0 %339
      %341 = vrot.lane.b32.xlu0 %v283, 112
      %v342 = vpop.permute.xlu0 %341
      %vm343 = vcmp.lt.s32.totalorder %v224, 112
      %v344 = vsel %vm343, %v340, %v342
      %v345 = vsel %vm343, %v342, %v340
      %v346 = vmul.f32 %v344, %v260
      %v347 = vmul.f32 %v345, %v261
      %348 = vrot.lane.b32.xlu0 %v216, 111
      %v349 = vpop.permute.xlu0 %348
      %350 = vrot.lane.b32.xlu0 %v283, 111
      %v351 = vpop.permute.xlu0 %350
      %vm352 = vcmp.lt.s32.totalorder %v224, 111
      %v353 = vsel %vm352, %v349, %v351
      %v354 = vsel %vm352, %v351, %v349
      %v355 = vmul.f32 %v353, %v280
      %v356 = vmul.f32 %v354, %v281
      %v359 = vrot.slane %v301, 5
      %v360 = vrot.slane %v302, 5
      %v365 = vrot.slane %v310, 2
      %v366 = vrot.slane %v311, 2
      %v371 = vrot.slane %v319, 7
      %v372 = vrot.slane %v320, 7
      %v375 = vcombine.low %v216, %v216
      %v379 = vrot.slane %v328, 1
      %v380 = vrot.slane %v329, 1
      %v385 = vrot.slane %v337, 6
      %v386 = vrot.slane %v338, 6
      %v391 = vrot.slane %v346, 3
      %v392 = vrot.slane %v347, 3
      %vm395 = vcmask 1042432
      %v396 = vsel %vm395, %v292, %v359
      %v397 = vsel %vm395, %v293, %v360
      %vm398 = vcmask 1045504
      %v399 = vsel %vm398, %v396, %v365
      %v400 = vsel %vm398, %v397, %v366
      %vm401 = vcmask 1040384
      %v402 = vsel %vm401, %v365, %v371
      %v403 = vsel %vm401, %v366, %v372
      %vm404 = vcmask 1043456
      %v405 = vsel %vm404, %v402, %v375
      %v406 = vsel %vm404, %v403, %v216
      %vm407 = vcmask 1046528
      %v408 = vsel %vm407, %v405, %v379
      %v409 = vsel %vm407, %v406, %v380
      %vm410 = vcmask 1041408
      %v411 = vsel %vm410, %v379, %v385
      %v412 = vsel %vm410, %v380, %v386
      %vm413 = vcmask 1044480
      %v414 = vsel %vm413, %v411, %v391
      %v415 = vsel %vm413, %v412, %v392
      %v416 = vpack.c.bf16 %v408, %v399
      %v417 = vpack.c.bf16 %v409, %v400
      %v418 = vpack.c.bf16 %v355, %v414
      %v419 = vpack.c.bf16 %v356, %v415
      %421 = vset.pattern.permute.xlu0 0
      %422 = vperm.xlu0 %421, %v220
      %v423 = vpop.permute.xlu0 %422
      %vm425 = vcmask 220160
      %v427 = vsel %vm425, %v217, 0
      %v429 = vsel %vm413, 4294967295, 65535
      %v430 = vsel %vm398, %v429, 0
      %v432 = vand.u32 %v418, %v430
      %v435 = vand.u32 %v419, %v430
      %437 = vmatprep.subr.bf16.mxu0 %v417
      %438 = vmatpush1.bf16.msra.mxu0 %v416
      %439 = vmatprep.subr.bf16.mxu0 %v435
      %440 = vmatpush1.bf16.msra.mxu0 %v432
      %441 = vmatprep.subr.bf16.mxu0 0
      %442 = vmatpush1.bf16.msra.mxu0 0
      %443 = vmatprep.subr.bf16.mxu0 0
      %444 = vmatpush1.bf16.msra.mxu0 0
      %445 = vmatprep.subr.bf16.mxu0 0
      %446 = vmatpush1.bf16.msra.mxu0 0
      %447 = vmatprep.subr.bf16.mxu0 0
      %448 = vmatpush1.bf16.msra.mxu0 0
      %449 = vmatprep.subr.bf16.mxu0 0
      %450 = vmatpush1.bf16.msra.mxu0 0
      %451 = vmatprep.subr.bf16.mxu0 0
      %452 = vmatpush1.bf16.msra.mxu0 0
      %453 = vmatprep.subr.bf16.mxu0 0
      %454 = vmatpush1.bf16.msra.mxu0 0
      %455 = vmatprep.subr.bf16.mxu0 0
      %456 = vmatpush1.bf16.msra.mxu0 0
      %457 = vmatprep.subr.bf16.mxu0 0
      %458 = vmatpush1.bf16.msra.mxu0 0
      %459 = vmatprep.subr.bf16.mxu0 0
      %460 = vmatpush1.bf16.msra.mxu0 0
      %461 = vmatprep.subr.bf16.mxu0 0
      %462 = vmatpush1.bf16.msra.mxu0 0
      %463 = vmatprep.subr.bf16.mxu0 0
      %464 = vmatpush1.bf16.msra.mxu0 0
      %465 = vmatprep.subr.bf16.mxu0 0
      %466 = vmatpush1.bf16.msra.mxu0 0
      %467 = vmatprep.subr.bf16.mxu0 0
      %468 = vmatpush1.bf16.msra.mxu0 0
      %469 = vmatprep.mubr.bf16.mxu0 0
      %470 = vmatmul.mubr.bf16.gmra.mrb[0].mxu0 %v427
      %v471 = vpop.f32.mrb[0].mxu0
      %v472 = vadd.f32 %v423, %v471
      %v473 = vpop.f32.mrb[0].mxu0
      %v474 = vadd.f32 %v423, %v473
      %v475 = vpop.f32.mrb[0].mxu0
      %v476 = vpop.f32.mrb[0].mxu0
      %477 = vdwg.mxu0
      %v478 = vmax.f32 %v472, 0.0
      %v479 = vmax.f32 %v474, 0.0
      %480 = vrot.lane.b32.xlu0 %v478, 17
      %v481 = vpop.permute.xlu0 %480
      %482 = vrot.lane.b32.xlu0 %v479, 17
      %v483 = vpop.permute.xlu0 %482
      %v484 = vsel %vm289, %v481, %v483
      %v485 = vsel %vm289, %v483, %v481
      %v486 = vmul.f32 %v485, %v274
      %v487 = vmul.f32 %v484, %v275
      %488 = vrot.lane.b32.xlu0 %v478, 16
      %v489 = vpop.permute.xlu0 %488
      %490 = vrot.lane.b32.xlu0 %v479, 16
      %v491 = vpop.permute.xlu0 %490
      %v492 = vsel %vm298, %v489, %v491
      %v493 = vsel %vm298, %v491, %v489
      %v494 = vmul.f32 %v493, %v254
      %v495 = vmul.f32 %v492, %v255
      %496 = vrot.lane.b32.xlu0 %v478, 15
      %v497 = vpop.permute.xlu0 %496
      %498 = vrot.lane.b32.xlu0 %v479, 15
      %v499 = vpop.permute.xlu0 %498
      %v500 = vsel %vm307, %v497, %v499
      %v501 = vsel %vm307, %v499, %v497
      %v502 = vmul.f32 %v501, %v276
      %v503 = vmul.f32 %v500, %v277
      %504 = vrot.lane.b32.xlu0 %v478, 1
      %v505 = vpop.permute.xlu0 %504
      %506 = vrot.lane.b32.xlu0 %v479, 1
      %v507 = vpop.permute.xlu0 %506
      %v508 = vsel %vm316, %v505, %v507
      %v509 = vsel %vm316, %v507, %v505
      %v510 = vmul.f32 %v509, %v266
      %v511 = vmul.f32 %v508, %v267
      %512 = vrot.lane.b32.xlu0 %v478, 127
      %v513 = vpop.permute.xlu0 %512
      %514 = vrot.lane.b32.xlu0 %v479, 127
      %v515 = vpop.permute.xlu0 %514
      %v516 = vsel %vm325, %v513, %v515
      %v517 = vsel %vm325, %v515, %v513
      %v518 = vmul.f32 %v516, %v272
      %v519 = vmul.f32 %v517, %v273
      %520 = vrot.lane.b32.xlu0 %v478, 113
      %v521 = vpop.permute.xlu0 %520
      %522 = vrot.lane.b32.xlu0 %v479, 113
      %v523 = vpop.permute.xlu0 %522
      %v524 = vsel %vm334, %v521, %v523
      %v525 = vsel %vm334, %v523, %v521
      %v526 = vmul.f32 %v524, %v278
      %v527 = vmul.f32 %v525, %v279
      %528 = vrot.lane.b32.xlu0 %v478, 112
      %v529 = vpop.permute.xlu0 %528
      %530 = vrot.lane.b32.xlu0 %v479, 112
      %v531 = vpop.permute.xlu0 %530
      %v532 = vsel %vm343, %v529, %v531
      %v533 = vsel %vm343, %v531, %v529
      %v534 = vmul.f32 %v532, %v260
      %v535 = vmul.f32 %v533, %v261
      %536 = vrot.lane.b32.xlu0 %v478, 111
      %v537 = vpop.permute.xlu0 %536
      %538 = vrot.lane.b32.xlu0 %v479, 111
      %v539 = vpop.permute.xlu0 %538
      %v540 = vsel %vm352, %v537, %v539
      %v541 = vsel %vm352, %v539, %v537
      %v542 = vmul.f32 %v540, %v280
      %v543 = vmul.f32 %v541, %v281
      %v546 = vrot.slane %v494, 5
      %v547 = vrot.slane %v495, 5
      %v552 = vrot.slane %v502, 2
      %v553 = vrot.slane %v503, 2
      %v558 = vrot.slane %v510, 7
      %v559 = vrot.slane %v511, 7
      %v564 = vrot.slane %v478, 4
      %v565 = vrot.slane %v479, 4
      %v570 = vrot.slane %v518, 1
      %v571 = vrot.slane %v519, 1
      %v576 = vrot.slane %v526, 6
      %v577 = vrot.slane %v527, 6
      %v582 = vrot.slane %v534, 3
      %v583 = vrot.slane %v535, 3
      %v586 = vsel %vm395, %v486, %v546
      %v587 = vsel %vm395, %v487, %v547
      %v588 = vsel %vm398, %v586, %v552
      %v589 = vsel %vm398, %v587, %v553
      %v590 = vsel %vm401, %v552, %v558
      %v591 = vsel %vm401, %v553, %v559
      %v592 = vsel %vm404, %v590, %v564
      %v593 = vsel %vm404, %v591, %v565
      %v594 = vsel %vm407, %v592, %v570
      %v595 = vsel %vm407, %v593, %v571
      %v596 = vsel %vm410, %v570, %v576
      %v597 = vsel %vm410, %v571, %v577
      %v598 = vsel %vm413, %v596, %v582
      %v599 = vsel %vm413, %v597, %v583
      %v600 = vpack.c.bf16 %v594, %v588
      %v601 = vpack.c.bf16 %v595, %v589
      %v602 = vpack.c.bf16 %v542, %v598
      %v603 = vpack.c.bf16 %v543, %v599
      %605 = vset.pattern.permute.xlu0 0
      %606 = vperm.xlu0 %605, %v221
      %v607 = vpop.permute.xlu0 %606
      %v610 = vsel %vm425, %v218, 0
      %v613 = vand.u32 %v602, %v430
      %v616 = vand.u32 %v603, %v430
      %618 = vmatprep.subr.bf16.mxu0 %v601
      %619 = vmatpush1.bf16.msra.mxu0 %v600
      %620 = vmatprep.subr.bf16.mxu0 %v616
      %621 = vmatpush1.bf16.msra.mxu0 %v613
      %622 = vmatprep.subr.bf16.mxu0 0
      %623 = vmatpush1.bf16.msra.mxu0 0
      %624 = vmatprep.subr.bf16.mxu0 0
      %625 = vmatpush1.bf16.msra.mxu0 0
      %626 = vmatprep.subr.bf16.mxu0 0
      %627 = vmatpush1.bf16.msra.mxu0 0
      %628 = vmatprep.subr.bf16.mxu0 0
      %629 = vmatpush1.bf16.msra.mxu0 0
      %630 = vmatprep.subr.bf16.mxu0 0
      %631 = vmatpush1.bf16.msra.mxu0 0
      %632 = vmatprep.subr.bf16.mxu0 0
      %633 = vmatpush1.bf16.msra.mxu0 0
      %634 = vmatprep.subr.bf16.mxu0 0
      %635 = vmatpush1.bf16.msra.mxu0 0
      %636 = vmatprep.subr.bf16.mxu0 0
      %637 = vmatpush1.bf16.msra.mxu0 0
      %638 = vmatprep.subr.bf16.mxu0 0
      %639 = vmatpush1.bf16.msra.mxu0 0
      %640 = vmatprep.subr.bf16.mxu0 0
      %641 = vmatpush1.bf16.msra.mxu0 0
      %642 = vmatprep.subr.bf16.mxu0 0
      %643 = vmatpush1.bf16.msra.mxu0 0
      %644 = vmatprep.subr.bf16.mxu0 0
      %645 = vmatpush1.bf16.msra.mxu0 0
      %646 = vmatprep.subr.bf16.mxu0 0
      %647 = vmatpush1.bf16.msra.mxu0 0
      %648 = vmatprep.subr.bf16.mxu0 0
      %649 = vmatpush1.bf16.msra.mxu0 0
      %650 = vmatprep.mubr.bf16.mxu0 0
      %651 = vmatmul.mubr.bf16.gmra.mrb[0].mxu0 %v610
      %v652 = vpop.f32.mrb[0].mxu0
      %v653 = vadd.f32 %v607, %v652
      %v654 = vpop.f32.mrb[0].mxu0
      %v655 = vadd.f32 %v607, %v654
      %v656 = vpop.f32.mrb[0].mxu0
      %v657 = vpop.f32.mrb[0].mxu0
      %658 = vdwg.mxu0
      %v659 = vmax.f32 %v653, 0.0
      %v660 = vmax.f32 %v655, 0.0
      %v661 = vadd.f32 %v478, %v659
      %v662 = vadd.f32 %v479, %v660
      %663 = vrot.lane.b32.xlu0 %v661, 17
      %v664 = vpop.permute.xlu0 %663
      %665 = vrot.lane.b32.xlu0 %v662, 17
      %v666 = vpop.permute.xlu0 %665
      %v667 = vsel %vm289, %v664, %v666
      %v668 = vsel %vm289, %v666, %v664
      %v669 = vmul.f32 %v668, %v274
      %v670 = vmul.f32 %v667, %v275
      %671 = vrot.lane.b32.xlu0 %v661, 16
      %v672 = vpop.permute.xlu0 %671
      %673 = vrot.lane.b32.xlu0 %v662, 16
      %v674 = vpop.permute.xlu0 %673
      %v675 = vsel %vm298, %v672, %v674
      %v676 = vsel %vm298, %v674, %v672
      %v677 = vmul.f32 %v676, %v254
      %v678 = vmul.f32 %v675, %v255
      %679 = vrot.lane.b32.xlu0 %v661, 15
      %v680 = vpop.permute.xlu0 %679
      %681 = vrot.lane.b32.xlu0 %v662, 15
      %v682 = vpop.permute.xlu0 %681
      %v683 = vsel %vm307, %v680, %v682
      %v684 = vsel %vm307, %v682, %v680
      %v685 = vmul.f32 %v684, %v276
      %v686 = vmul.f32 %v683, %v277
      %687 = vrot.lane.b32.xlu0 %v661, 1
      %v688 = vpop.permute.xlu0 %687
      %689 = vrot.lane.b32.xlu0 %v662, 1
      %v690 = vpop.permute.xlu0 %689
      %v691 = vsel %vm316, %v688, %v690
      %v692 = vsel %vm316, %v690, %v688
      %v693 = vmul.f32 %v692, %v266
      %v694 = vmul.f32 %v691, %v267
      %695 = vrot.lane.b32.xlu0 %v661, 127
      %v696 = vpop.permute.xlu0 %695
      %697 = vrot.lane.b32.xlu0 %v662, 127
      %v698 = vpop.permute.xlu0 %697
      %v699 = vsel %vm325, %v696, %v698
      %v700 = vsel %vm325, %v698, %v696
      %v701 = vmul.f32 %v699, %v272
      %v702 = vmul.f32 %v700, %v273
      %703 = vrot.lane.b32.xlu0 %v661, 113
      %v704 = vpop.permute.xlu0 %703
      %705 = vrot.lane.b32.xlu0 %v662, 113
      %v706 = vpop.permute.xlu0 %705
      %v707 = vsel %vm334, %v704, %v706
      %v708 = vsel %vm334, %v706, %v704
      %v709 = vmul.f32 %v707, %v278
      %v710 = vmul.f32 %v708, %v279
      %711 = vrot.lane.b32.xlu0 %v661, 112
      %v712 = vpop.permute.xlu0 %711
      %713 = vrot.lane.b32.xlu0 %v662, 112
      %v714 = vpop.permute.xlu0 %713
      %v715 = vsel %vm343, %v712, %v714
      %v716 = vsel %vm343, %v714, %v712
      %v717 = vmul.f32 %v715, %v260
      %v718 = vmul.f32 %v716, %v261
      %719 = vrot.lane.b32.xlu0 %v661, 111
      %v720 = vpop.permute.xlu0 %719
      %721 = vrot.lane.b32.xlu0 %v662, 111
      %v722 = vpop.permute.xlu0 %721
      %v723 = vsel %vm352, %v720, %v722
      %v724 = vsel %vm352, %v722, %v720
      %v725 = vmul.f32 %v723, %v280
      %v726 = vmul.f32 %v724, %v281
      %v729 = vrot.slane %v677, 5
      %v730 = vrot.slane %v678, 5
      %v735 = vrot.slane %v685, 2
      %v736 = vrot.slane %v686, 2
      %v741 = vrot.slane %v693, 7
      %v742 = vrot.slane %v694, 7
      %v747 = vrot.slane %v661, 4
      %v748 = vrot.slane %v662, 4
      %v753 = vrot.slane %v701, 1
      %v754 = vrot.slane %v702, 1
      %v759 = vrot.slane %v709, 6
      %v760 = vrot.slane %v710, 6
      %v765 = vrot.slane %v717, 3
      %v766 = vrot.slane %v718, 3
      %v769 = vsel %vm395, %v669, %v729
      %v770 = vsel %vm395, %v670, %v730
      %v771 = vsel %vm398, %v769, %v735
      %v772 = vsel %vm398, %v770, %v736
      %v773 = vsel %vm401, %v735, %v741
      %v774 = vsel %vm401, %v736, %v742
      %v775 = vsel %vm404, %v773, %v747
      %v776 = vsel %vm404, %v774, %v748
      %v777 = vsel %vm407, %v775, %v753
      %v778 = vsel %vm407, %v776, %v754
      %v779 = vsel %vm410, %v753, %v759
      %v780 = vsel %vm410, %v754, %v760
      %v781 = vsel %vm413, %v779, %v765
      %v782 = vsel %vm413, %v780, %v766
      %v783 = vpack.c.bf16 %v777, %v771
      %v784 = vpack.c.bf16 %v778, %v772
      %v785 = vpack.c.bf16 %v725, %v781
      %v786 = vpack.c.bf16 %v726, %v782
      %788 = vset.pattern.permute.xlu0 0
      %789 = vperm.xlu0 %788, %v222
      %v790 = vpop.permute.xlu0 %789
      %v793 = vsel %vm425, %v219, 0
      %v796 = vand.u32 %v785, %v430
      %v799 = vand.u32 %v786, %v430
      %801 = vmatprep.subr.bf16.mxu0 %v784
      %802 = vmatpush1.bf16.msra.mxu0 %v783
      %803 = vmatprep.subr.bf16.mxu0 %v799
      %804 = vmatpush1.bf16.msra.mxu0 %v796
      %805 = vmatprep.subr.bf16.mxu0 0
      %806 = vmatpush1.bf16.msra.mxu0 0
      %807 = vmatprep.subr.bf16.mxu0 0
      %808 = vmatpush1.bf16.msra.mxu0 0
      %809 = vmatprep.subr.bf16.mxu0 0
      %810 = vmatpush1.bf16.msra.mxu0 0
      %811 = vmatprep.subr.bf16.mxu0 0
      %812 = vmatpush1.bf16.msra.mxu0 0
      %813 = vmatprep.subr.bf16.mxu0 0
      %814 = vmatpush1.bf16.msra.mxu0 0
      %815 = vmatprep.subr.bf16.mxu0 0
      %816 = vmatpush1.bf16.msra.mxu0 0
      %817 = vmatprep.subr.bf16.mxu0 0
      %818 = vmatpush1.bf16.msra.mxu0 0
      %819 = vmatprep.subr.bf16.mxu0 0
      %820 = vmatpush1.bf16.msra.mxu0 0
      %821 = vmatprep.subr.bf16.mxu0 0
      %822 = vmatpush1.bf16.msra.mxu0 0
      %823 = vmatprep.subr.bf16.mxu0 0
      %824 = vmatpush1.bf16.msra.mxu0 0
      %825 = vmatprep.subr.bf16.mxu0 0
      %826 = vmatpush1.bf16.msra.mxu0 0
      %827 = vmatprep.subr.bf16.mxu0 0
      %828 = vmatpush1.bf16.msra.mxu0 0
      %829 = vmatprep.subr.bf16.mxu0 0
      %830 = vmatpush1.bf16.msra.mxu0 0
      %831 = vmatprep.subr.bf16.mxu0 0
      %832 = vmatpush1.bf16.msra.mxu0 0
      %833 = vmatprep.mubr.bf16.mxu0 0
      %834 = vmatmul.mubr.bf16.gmra.mrb[0].mxu0 %v793
      %v835 = vpop.f32.mrb[0].mxu0
      %v836 = vadd.f32 %v790, %v835
      %v837 = vpop.f32.mrb[0].mxu0
      %v838 = vadd.f32 %v790, %v837
      %v839 = vpop.f32.mrb[0].mxu0
      %v840 = vpop.f32.mrb[0].mxu0
      %841 = vdwg.mxu0
      %v842 = vxor.u32 %v836, 2147483648
      %v843 = vxor.u32 %v838, 2147483648
      %v844 = vmul.f32 %v842, 1.442695
      %v845 = vpow.pop %v844
      %v846 = vmul.f32 %v843, 1.442695
      %v847 = vpow.pop %v846
      %v848 = vadd.f32 %v845, 1.0
      %v849 = vadd.f32 %v847, 1.0
      %v850 = vrcp.pop %v848
      %v851 = vmul.f32 1.0, %v850
      %v852 = vrcp.pop %v849
      %v853 = vmul.f32 1.0, %v852
      %v854 = vadd.f32 %v851, %v216
      %v855 = vadd.f32 %v853, %v283
      %v856 = vmax.f32 %v854, 0.0001
      %v857 = vmax.f32 %v855, 0.0001
      %v858 = vmin.f32 %v856, 1.0
      %v859 = vmin.f32 %v857, 1.0
      %v862 = vcombine.low %v858, %v859
      %864 = vst [vmem:[%s207] sm:$0x77] %v862
      %v865 = vrcp.pop %v858
      %v866 = vrcp.pop %v859
      %v869 = vcombine.low %v865, %v866
      %v871 = vmul.f32 %v216, %v869
      %v872 = vmax.f32 %v871, 0.0
      %v873 = vmin.f32 %v872, 1.0
      %874 = vst [vmem:[%s213] sm:$0x77] %v873
      %s875 = smul.u32 2, %s16
      %p876 = scmp.lt.s32.totalorder %s875, 3
      %s877 = scalar_select %p876, %s875, 3
      %s878 = smul.addr %s877, 4
      %s879 = scalar_lea.vmem %s3, %s878
      %s880 = smul.u32 2, %s16
      %p881 = scmp.lt.s32.totalorder %s880, 3
      %s882 = scalar_select %p881, %s880, 3
      %s883 = smul.addr %s882, 4
      %s884 = scalar_lea.vmem %s4, %s883
      // Predicated region
      $region33: #{finetune_pallas.1} parent=31 // pred_check
        %p885 = pneg %p102
      $region34: #{finetune_pallas.1} parent=31 // pred_check_branch
        %887 = sbr.rel (%p885) target = $region36
      $region35: #{finetune_pallas.1} parent=31 // pred_region
        %s888 = smul.u32 2, %s16
      $region36: #{finetune_pallas.1} parent=31 // pred_fallthru
        _
      // Predicated region
      $region37: #{finetune_pallas.1} parent=31 // pred_check
        %p889 = pneg %p128
      $region38: #{finetune_pallas.1} parent=31 // pred_check_branch
        %891 = sbr.rel (%p889) target = $region40
      $region39: #{finetune_pallas.1} parent=31 // pred_region
        %s892 = smul.u32 2, %s16
      $region40: #{finetune_pallas.1} parent=31 // pred_fallthru
        _
    $region32: #{finetune_pallas.1} parent=5 // pred_fallthru
      _
    %p893 = scmp.le.s32.totalorder 2, %s11
    // Predicated region
    $region41: #{finetune_pallas.1} parent=5 // pred_check
      %p894 = pneg %p893
    $region42: #{finetune_pallas.1} parent=5 // pred_check_branch
      %896 = sbr.rel (%p894) target = $region44
    $region43: #{finetune_pallas.1} parent=5 // pred_region
      %s897 = ssub.s32 %s11, 2
      // Predicated region
      $region45: #{finetune_pallas.1} parent=43 // pred_check
        %p898 = pneg %p108
      $region46: #{finetune_pallas.1} parent=43 // pred_check_branch
        %900 = sbr.rel (%p898) target = $region48
      $region47: #{finetune_pallas.1} parent=43 // pred_region
        %s901 = smul.u32 2, %s17
        %p902 = scmp.lt.s32.totalorder %s901, 3
        %s903 = scalar_select %p902, %s901, 3
        %s904 = smul.addr %s903, 4
        %s905 = scalar_lea.vmem %s3, %s904
      $region48: #{finetune_pallas.1} parent=43 // pred_fallthru
        _
      // Predicated region
      $region49: #{finetune_pallas.1} parent=43 // pred_check
        %p906 = pneg %p134
      $region50: #{finetune_pallas.1} parent=43 // pred_check_branch
        %908 = sbr.rel (%p906) target = $region52
      $region51: #{finetune_pallas.1} parent=43 // pred_region
        %s909 = smul.u32 2, %s17
        %p910 = scmp.lt.s32.totalorder %s909, 3
        %s911 = scalar_select %p910, %s909, 3
        %s912 = smul.addr %s911, 4
        %s913 = scalar_lea.vmem %s4, %s912
      $region52: #{finetune_pallas.1} parent=43 // pred_fallthru
        _
    $region44: #{finetune_pallas.1} parent=5 // pred_fallthru
      _
  $region6: #{finetune_pallas.1} parent=0 // loop_footer
    %s15 = sadd.s32 1, %s11
  $region7: #{finetune_pallas.1} parent=0 // loop_footer_branch
    %10 = sbr.rel target = $region3
  $region8: #{finetune_pallas.1} parent=0 // loop_exit
    _

</llo_original>
